<compile_context>
chip_gen: v7x
topology: tpu7x:2x2x1
jax: 0.10.0
libtpu: 0.0.40
codegen_flags: <defaults>
</compile_context>

<pallas_src>
import jax
import jax.numpy as jnp
from jax.experimental import pallas as pl
from jax.experimental.pallas import tpu as pltpu


# ---------------------------------------------------------------------------
# Fused kernel: block-diagonal MLP stack + final linear, all in VMEM.
# ---------------------------------------------------------------------------
def _make_fused_kernel(n_hidden):
    n_lin = n_hidden + 1  # hidden linears + the num_final projection

    def kernel(*refs):
        x_ref = refs[0]
        wb_refs = refs[1 : 1 + 2 * n_lin]
        wf_ref = refs[1 + 2 * n_lin]
        bf_ref = refs[2 + 2 * n_lin]
        acts_ref = refs[3 + 2 * n_lin]
        out_ref = refs[4 + 2 * n_lin]

        h = x_ref[...]
        for j in range(n_lin):
            w_ref = wb_refs[2 * j]
            b_ref = wb_refs[2 * j + 1]
            h = (
                jnp.dot(h.astype(w_ref.dtype), w_ref[...],
                        preferred_element_type=jnp.float32)
                + b_ref[...]
            )
            if j < n_lin - 1:  # ReLU after every hidden linear, not after the last
                h = jnp.maximum(h, 0.0)

        acts_ref[...] = h.astype(acts_ref.dtype)
        logit = (
            jnp.dot(h.astype(wf_ref.dtype), wf_ref[...],
                    preferred_element_type=jnp.float32)
            + bf_ref[...]
        )
        out_ref[...] = logit.astype(out_ref.dtype)

    return kernel


def _pick_batch_tile(batch):
    # Large batches stream in 128-1024-row tiles; small batches use one block.
    for t in (1024, 512, 256, 128):
        if batch % t == 0:
            return t
    return batch


def _fused_forward(x_packed, packed_wb, wf, bf, num_final, num_layers):
    batch, in_feat = x_packed.shape
    feat_acts = num_layers * num_final
    n_hidden = len(packed_wb) - 1
    tile_b = _pick_batch_tile(batch)
    grid = (batch // tile_b,)

    in_specs = [pl.BlockSpec((tile_b, in_feat), lambda i: (i, 0))]
    inputs = [x_packed]
    for (w, b) in packed_wb:
        in_specs.append(pl.BlockSpec(w.shape, lambda i: (0, 0)))
        in_specs.append(pl.BlockSpec(b.shape, lambda i: (0, 0)))
        inputs.append(w)
        inputs.append(b)
    in_specs.append(pl.BlockSpec(wf.shape, lambda i: (0, 0)))
    in_specs.append(pl.BlockSpec(bf.shape, lambda i: (0, 0)))
    inputs.append(wf)
    inputs.append(bf)

    out_shape = (
        jax.ShapeDtypeStruct((batch, feat_acts), jnp.float32),  # acts (lane-dense slab)
        jax.ShapeDtypeStruct((batch, 1), jnp.float32),          # logits
    )
    out_specs = (
        pl.BlockSpec((tile_b, feat_acts), lambda i: (i, 0)),
        pl.BlockSpec((tile_b, 1), lambda i: (i, 0)),
    )

    acts, out = pl.pallas_call(
        _make_fused_kernel(n_hidden),
        out_shape=out_shape,
        grid_spec=pltpu.PrefetchScalarGridSpec(
            num_scalar_prefetch=0,
            grid=grid,
            in_specs=in_specs,
            out_specs=out_specs,
        ),
        compiler_params=pltpu.CompilerParams(
            dimension_semantics=("parallel",),  # batch axis -> megacore on v7x
        ),
    )(*inputs)
    return acts, out


# ---------------------------------------------------------------------------
# Module wrapper
# ---------------------------------------------------------------------------
def _block_diag(blocks):
    """(L, din, dout) -> (L*din, L*dout) block-diagonal matrix."""
    L, din, dout = blocks.shape
    out = jnp.zeros((L * din, L * dout), blocks.dtype)
    for i in range(L):
        out = out.at[i * din:(i + 1) * din, i * dout:(i + 1) * dout].set(blocks[i])
    return out


class AffinityMetaClassifierPallas:
    def __init__(self, num_dim, num_layers, num_final=16, inner_dims=(32, 16),
                 key=None, use_bf16=False):
        assert len(inner_dims) >= 1, "inner_dims must have at least 1 element"
        self.num_dim = num_dim
        self.num_layers = num_layers
        self.num_final = num_final
        self.inner_dims = tuple(inner_dims)
        self.use_bf16 = use_bf16

        dims = [num_dim] + list(inner_dims) + [num_final]
        L = num_layers

        if key is None:
            key = jax.random.PRNGKey(0)
        n_lin = len(dims) - 1
        ks = jax.random.split(key, 2 * n_lin + 2)

        def init(k, shape, fan_in):
            # uniform(-1/sqrt(fan_in), 1/sqrt(fan_in)), like nn.Linear default init
            bound = 1.0 / jnp.sqrt(jnp.float32(fan_in))
            return jax.random.uniform(k, shape, jnp.float32, -bound, bound)

        # Per-layer weights, stored (in, out) so y = x @ W + b.
        self.per_layer_w = []
        self.per_layer_b = []
        for j in range(n_lin):
            w = init(ks[2 * j], (L, dims[j], dims[j + 1]), dims[j])
            b = init(ks[2 * j + 1], (L, dims[j + 1]), dims[j])
            self.per_layer_w.append(w)
            self.per_layer_b.append(b)

        feat = num_final * num_layers
        self.wf = init(ks[2 * n_lin], (feat, 1), feat)
        self.bf = init(ks[2 * n_lin + 1], (1, 1), feat)

        # Block-diagonal packed weights consumed by the fused kernel.
        op_dtype = jnp.bfloat16 if use_bf16 else jnp.float32
        self.packed_wb = []
        for w, b in zip(self.per_layer_w, self.per_layer_b):
            wp = _block_diag(w).astype(op_dtype)
            bp = b.reshape(1, -1).astype(jnp.float32)  # bias added in f32
            self.packed_wb.append((wp, bp))
        self.wf_op = self.wf.astype(op_dtype)
        self.op_dtype = op_dtype

    def __call__(self, x, get_latent=False):
        # x: (num_layers, batch, num_dim)  ->  (batch, num_layers*num_dim)
        L, batch, num_dim = x.shape
        x_packed = jnp.transpose(x, (1, 0, 2)).reshape(batch, L * num_dim)
        x_packed = x_packed.astype(self.op_dtype)
        acts, out = _fused_forward(
            x_packed, self.packed_wb, self.wf_op, self.bf,
            self.num_final, self.num_layers,
        )
        if get_latent:
            return acts
        return out

    # pure-JAX reference for verification
    def reference(self, x):
        outs = []
        for i in range(self.num_layers):
            h = x[i]
            n_lin = len(self.per_layer_w)
            for j in range(n_lin):
                h = h @ self.per_layer_w[j][i] + self.per_layer_b[j][i]
                if j < n_lin - 1:
                    h = jnp.maximum(h, 0.0)
            outs.append(h)
        acts = jnp.concatenate(outs, axis=1)
        return acts @ self.wf + self.bf


if __name__ == "__main__":
    # small, module-consistent shapes
    num_layers = 4
    batch = 8
    num_dim = 32

    key = jax.random.PRNGKey(0)
    k_x, k_p = jax.random.split(key)
    x = jax.random.normal(k_x, (num_layers, batch, num_dim), jnp.float32)

    model = AffinityMetaClassifierPallas(
        num_dim=num_dim, num_layers=num_layers, num_final=16,
        inner_dims=(32, 16), key=k_p, use_bf16=False,
    )

    out = model(x)
    out = jax.block_until_ready(out)

    ref = model.reference(x)
    assert out.shape == (batch, 1), out.shape
    assert jnp.allclose(out, ref, atol=1e-3, rtol=1e-3), "mismatch vs reference"

    # latent path (get_latent=True) sanity check
    acts = jax.block_until_ready(model(x, get_latent=True))
    assert acts.shape == (batch, num_layers * 16), acts.shape

    print("KERNEL_OK")
</pallas_src>

<mosaic_0001>
module attributes {stable_mosaic.version = 11 : i64} {
  func.func @kernel(%arg0: i32, %arg1: memref<8x128xf32, #tpu.memory_space<vmem>>, %arg2: memref<128x128xf32, #tpu.memory_space<vmem>>, %arg3: memref<1x128xf32, #tpu.memory_space<vmem>>, %arg4: memref<128x64xf32, #tpu.memory_space<vmem>>, %arg5: memref<1x64xf32, #tpu.memory_space<vmem>>, %arg6: memref<64x64xf32, #tpu.memory_space<vmem>>, %arg7: memref<1x64xf32, #tpu.memory_space<vmem>>, %arg8: memref<64x1xf32, #tpu.memory_space<vmem>>, %arg9: memref<1x1xf32, #tpu.memory_space<vmem>>, %arg10: memref<8x64xf32, #tpu.memory_space<vmem>>, %arg11: memref<8x1xf32, #tpu.memory_space<vmem>>) attributes {dimension_semantics = [#tpu.dimension_semantics<parallel>], iteration_bounds = array<i64: 1>, scalar_prefetch = 0 : i64, scratch_operands = 0 : i64, tpu.core_type = #tpu.core_type<tc>, window_params = [{transform_indices = @transform_0, window_bounds = array<i64: 8, 128>}, {pipeline_mode = #tpu.pipeline_mode<synchronous>, transform_indices = @transform_1, window_bounds = array<i64: 128, 128>}, {pipeline_mode = #tpu.pipeline_mode<synchronous>, transform_indices = @transform_2, window_bounds = array<i64: 1, 128>}, {pipeline_mode = #tpu.pipeline_mode<synchronous>, transform_indices = @transform_3, window_bounds = array<i64: 128, 64>}, {pipeline_mode = #tpu.pipeline_mode<synchronous>, transform_indices = @transform_4, window_bounds = array<i64: 1, 64>}, {pipeline_mode = #tpu.pipeline_mode<synchronous>, transform_indices = @transform_5, window_bounds = array<i64: 64, 64>}, {pipeline_mode = #tpu.pipeline_mode<synchronous>, transform_indices = @transform_6, window_bounds = array<i64: 1, 64>}, {pipeline_mode = #tpu.pipeline_mode<synchronous>, transform_indices = @transform_7, window_bounds = array<i64: 64, 1>}, {pipeline_mode = #tpu.pipeline_mode<synchronous>, transform_indices = @transform_8, window_bounds = array<i64: 1, 1>}, {transform_indices = @transform_9, window_bounds = array<i64: 8, 64>}, {transform_indices = @transform_10, window_bounds = array<i64: 8, 1>}]} {
    %c0 = arith.constant 0 : index
    %c0_0 = arith.constant 0 : index
    %0 = vector.load %arg1[%c0, %c0_0] : memref<8x128xf32, #tpu.memory_space<vmem>>, vector<8x128xf32>
    %c0_1 = arith.constant 0 : index
    %c0_2 = arith.constant 0 : index
    %1 = vector.load %arg2[%c0_1, %c0_2] : memref<128x128xf32, #tpu.memory_space<vmem>>, vector<128x128xf32>
    %cst = arith.constant dense<0.000000e+00> : vector<8x128xf32>
    %2 = tpu.matmul %0, %1, %cst {dimension_numbers = #tpu.dot_dimension_numbers<[1], [0], [0], [1], [0, 0, 1, 1], [], []>} : vector<8x128xf32>, vector<128x128xf32>, vector<8x128xf32> -> vector<8x128xf32>
    %c0_3 = arith.constant 0 : index
    %c0_4 = arith.constant 0 : index
    %3 = vector.load %arg3[%c0_3, %c0_4] : memref<1x128xf32, #tpu.memory_space<vmem>>, vector<1x128xf32>
    %4 = vector.broadcast %3 : vector<1x128xf32> to vector<8x128xf32>
    %5 = arith.addf %2, %4 : vector<8x128xf32>
    %cst_5 = arith.constant 0.000000e+00 : f32
    %6 = vector.broadcast %cst_5 : f32 to vector<8x128xf32>
    %7 = arith.maximumf %5, %6 : vector<8x128xf32>
    %c0_6 = arith.constant 0 : index
    %c0_7 = arith.constant 0 : index
    %8 = vector.load %arg4[%c0_6, %c0_7] : memref<128x64xf32, #tpu.memory_space<vmem>>, vector<128x64xf32>
    %cst_8 = arith.constant dense<0.000000e+00> : vector<8x64xf32>
    %9 = tpu.matmul %7, %8, %cst_8 {dimension_numbers = #tpu.dot_dimension_numbers<[1], [0], [0], [1], [0, 0, 1, 1], [], []>} : vector<8x128xf32>, vector<128x64xf32>, vector<8x64xf32> -> vector<8x64xf32>
    %c0_9 = arith.constant 0 : index
    %c0_10 = arith.constant 0 : index
    %10 = vector.load %arg5[%c0_9, %c0_10] : memref<1x64xf32, #tpu.memory_space<vmem>>, vector<1x64xf32>
    %11 = vector.broadcast %10 : vector<1x64xf32> to vector<8x64xf32>
    %12 = arith.addf %9, %11 : vector<8x64xf32>
    %cst_11 = arith.constant 0.000000e+00 : f32
    %13 = vector.broadcast %cst_11 : f32 to vector<8x64xf32>
    %14 = arith.maximumf %12, %13 : vector<8x64xf32>
    %c0_12 = arith.constant 0 : index
    %c0_13 = arith.constant 0 : index
    %15 = vector.load %arg6[%c0_12, %c0_13] : memref<64x64xf32, #tpu.memory_space<vmem>>, vector<64x64xf32>
    %cst_14 = arith.constant dense<0.000000e+00> : vector<8x64xf32>
    %16 = tpu.matmul %14, %15, %cst_14 {dimension_numbers = #tpu.dot_dimension_numbers<[1], [0], [0], [1], [0, 0, 1, 1], [], []>} : vector<8x64xf32>, vector<64x64xf32>, vector<8x64xf32> -> vector<8x64xf32>
    %c0_15 = arith.constant 0 : index
    %c0_16 = arith.constant 0 : index
    %17 = vector.load %arg7[%c0_15, %c0_16] : memref<1x64xf32, #tpu.memory_space<vmem>>, vector<1x64xf32>
    %18 = vector.broadcast %17 : vector<1x64xf32> to vector<8x64xf32>
    %19 = arith.addf %16, %18 : vector<8x64xf32>
    %c0_17 = arith.constant 0 : index
    %c0_18 = arith.constant 0 : index
    %20 = vector.load %arg10[%c0_17, %c0_18] : memref<8x64xf32, #tpu.memory_space<vmem>>, vector<8x64xf32>
    tpu.vector_store %arg10[%c0_17, %c0_18], %19 {strides = array<i32>} : memref<8x64xf32, #tpu.memory_space<vmem>>, vector<8x64xf32>,
    %c0_19 = arith.constant 0 : index
    %c0_20 = arith.constant 0 : index
    %21 = vector.load %arg8[%c0_19, %c0_20] : memref<64x1xf32, #tpu.memory_space<vmem>>, vector<64x1xf32>
    %cst_21 = arith.constant dense<0.000000e+00> : vector<8x1xf32>
    %22 = tpu.matmul %19, %21, %cst_21 {dimension_numbers = #tpu.dot_dimension_numbers<[1], [0], [0], [1], [0, 0, 1, 1], [], []>} : vector<8x64xf32>, vector<64x1xf32>, vector<8x1xf32> -> vector<8x1xf32>
    %c0_22 = arith.constant 0 : index
    %c0_23 = arith.constant 0 : index
    %23 = vector.load %arg9[%c0_22, %c0_23] : memref<1x1xf32, #tpu.memory_space<vmem>>, vector<1x1xf32>
    %24 = vector.broadcast %23 : vector<1x1xf32> to vector<8x1xf32>
    %25 = arith.addf %22, %24 : vector<8x1xf32>
    %c0_24 = arith.constant 0 : index
    %c0_25 = arith.constant 0 : index
    %26 = vector.load %arg11[%c0_24, %c0_25] : memref<8x1xf32, #tpu.memory_space<vmem>>, vector<8x1xf32>
    tpu.vector_store %arg11[%c0_24, %c0_25], %25 {strides = array<i32>} : memref<8x1xf32, #tpu.memory_space<vmem>>, vector<8x1xf32>,
    return
  }
  func.func @transform_0(%arg0: i32) -> (i32, i32) {
    %c0_i32 = arith.constant 0 : i32
    %c0_i32_0 = arith.constant 0 : i32
    return %arg0, %c0_i32 : i32, i32
  }
  func.func @transform_1(%arg0: i32) -> (i32, i32) {
    %c0_i32 = arith.constant 0 : i32
    %c0_i32_0 = arith.constant 0 : i32
    %c0_i32_1 = arith.constant 0 : i32
    return %c0_i32, %c0_i32_0 : i32, i32
  }
  func.func @transform_2(%arg0: i32) -> (i32, i32) {
    %c0_i32 = arith.constant 0 : i32
    %c0_i32_0 = arith.constant 0 : i32
    %c0_i32_1 = arith.constant 0 : i32
    return %c0_i32, %c0_i32_0 : i32, i32
  }
  func.func @transform_3(%arg0: i32) -> (i32, i32) {
    %c0_i32 = arith.constant 0 : i32
    %c0_i32_0 = arith.constant 0 : i32
    %c0_i32_1 = arith.constant 0 : i32
    return %c0_i32, %c0_i32_0 : i32, i32
  }
  func.func @transform_4(%arg0: i32) -> (i32, i32) {
    %c0_i32 = arith.constant 0 : i32
    %c0_i32_0 = arith.constant 0 : i32
    %c0_i32_1 = arith.constant 0 : i32
    return %c0_i32, %c0_i32_0 : i32, i32
  }
  func.func @transform_5(%arg0: i32) -> (i32, i32) {
    %c0_i32 = arith.constant 0 : i32
    %c0_i32_0 = arith.constant 0 : i32
    %c0_i32_1 = arith.constant 0 : i32
    return %c0_i32, %c0_i32_0 : i32, i32
  }
  func.func @transform_6(%arg0: i32) -> (i32, i32) {
    %c0_i32 = arith.constant 0 : i32
    %c0_i32_0 = arith.constant 0 : i32
    %c0_i32_1 = arith.constant 0 : i32
    return %c0_i32, %c0_i32_0 : i32, i32
  }
  func.func @transform_7(%arg0: i32) -> (i32, i32) {
    %c0_i32 = arith.constant 0 : i32
    %c0_i32_0 = arith.constant 0 : i32
    %c0_i32_1 = arith.constant 0 : i32
    return %c0_i32, %c0_i32_0 : i32, i32
  }
  func.func @transform_8(%arg0: i32) -> (i32, i32) {
    %c0_i32 = arith.constant 0 : i32
    %c0_i32_0 = arith.constant 0 : i32
    %c0_i32_1 = arith.constant 0 : i32
    return %c0_i32, %c0_i32_0 : i32, i32
  }
  func.func @transform_9(%arg0: i32) -> (i32, i32) {
    %c0_i32 = arith.constant 0 : i32
    %c0_i32_0 = arith.constant 0 : i32
    return %arg0, %c0_i32 : i32, i32
  }
  func.func @transform_10(%arg0: i32) -> (i32, i32) {
    %c0_i32 = arith.constant 0 : i32
    %c0_i32_0 = arith.constant 0 : i32
    return %arg0, %c0_i32 : i32, i32
  }
}

</mosaic_0001>

<llo_original>
// kernel: tpu_custom_call.1
$region0: #{tpu_custom_call.1}
  #allocation0 [shape = 'u32[]', space=smem, size = 0x4, offset = 0x4, fixed_abs, tag = 'smem constant byte address 0x4 - core index']
  #allocation1 [shape = 'u32[144,128]{1,0:T(1,128)}', space=vmem, size = 0x12000, scoped, tag = 'internal scratch']
  #allocation2 [shape = 'f32[1,1]{1,0:T(1,128)S(1)}', space=vmem, size = 0x200, scoped, tag = 'scoped memory for tpu_custom_call.1']
  %s0 = inlined_call_operand.vmem [shape: f32[8,128], index: 0, kind: input, shape index: {}]
  %s1 = inlined_call_operand.vmem [shape: f32[128,128], index: 1, kind: input, shape index: {}]
  %s2 = inlined_call_operand.vmem [shape: f32[1,128], index: 2, kind: input, shape index: {}]
  %s3 = inlined_call_operand.vmem [shape: f32[128,64], index: 3, kind: input, shape index: {}]
  %s4 = inlined_call_operand.vmem [shape: f32[1,64], index: 4, kind: input, shape index: {}]
  %s5 = inlined_call_operand.vmem [shape: f32[64,64], index: 5, kind: input, shape index: {}]
  %s6 = inlined_call_operand.vmem [shape: f32[1,64], index: 6, kind: input, shape index: {}]
  %s7 = inlined_call_operand.vmem [shape: f32[64,1], index: 7, kind: input, shape index: {}]
  %s8 = inlined_call_operand.<no memory space> [shape: f32[1,1], index: 8, kind: input, shape index: {}]
  %s9 = inlined_call_operand.hbm [shape: f32[8,64], index: 9, kind: output, shape index: {0}]
  %s10 = inlined_call_operand.vmem [shape: f32[8,1], index: 10, kind: output, shape index: {1}]
  %11 = xla_tuple %s9, %s10
  %s12 = sld [smem:[#allocation0]]
  $region54: #{tpu_custom_call.1} parent=0
    _
  %s14 = ssub.s32 1, %s12
  %s15 = scalar_select 0, %s14, %s12
  %v16 = vstv %s8
  %17 = vst [vmem:[#allocation2] sm:$0x1] %v16
  $region1: #{tpu_custom_call.1} parent=0
    #allocation3 [shape = 'u8[4096]{0}', space=vmem, size = 0x1000, scoped, tag = 'output window, operand 0, single buffered']
    #allocation4 [shape = 's32[1]{0}', space=sflag, size = 0x4, scoped, tag = 'scoped memory for tpu_custom_call.1']
    %18 = vsyncpa [#allocation4], 0
    // Predicated region
    $region2: #{tpu_custom_call.1} parent=1 // pred_check
      _
    $region3: #{tpu_custom_call.1} parent=1 // pred_check_branch
      %20 = sbr.rel (0) target = $region5
    $region4: #{tpu_custom_call.1} parent=1 // pred_region
      _
    $region5: #{tpu_custom_call.1} parent=1 // pred_fallthru
      _
    // Predicated region
    $region6: #{tpu_custom_call.1} parent=1 // pred_check
      _
    $region7: #{tpu_custom_call.1} parent=1 // pred_check_branch
      %22 = sbr.rel (0) target = $region9
    $region8: #{tpu_custom_call.1} parent=1 // pred_region
      _
    $region9: #{tpu_custom_call.1} parent=1 // pred_fallthru
      _
    // Predicated region
    $region10: #{tpu_custom_call.1} parent=1 // pred_check
      _
    $region11: #{tpu_custom_call.1} parent=1 // pred_check_branch
      %24 = sbr.rel (0) target = $region13
    $region12: #{tpu_custom_call.1} parent=1 // pred_region
      _
    $region13: #{tpu_custom_call.1} parent=1 // pred_fallthru
      _
    // Predicated region
    $region14: #{tpu_custom_call.1} parent=1 // pred_check
      _
    $region15: #{tpu_custom_call.1} parent=1 // pred_check_branch
      %26 = sbr.rel (0) target = $region17
    $region16: #{tpu_custom_call.1} parent=1 // pred_region
      _
    $region17: #{tpu_custom_call.1} parent=1 // pred_fallthru
      _
    // Predicated region
    $region18: #{tpu_custom_call.1} parent=1 // pred_check
      _
    $region19: #{tpu_custom_call.1} parent=1 // pred_check_branch
      %28 = sbr.rel (0) target = $region21
    $region20: #{tpu_custom_call.1} parent=1 // pred_region
      _
    $region21: #{tpu_custom_call.1} parent=1 // pred_fallthru
      _
    // Predicated region
    $region22: #{tpu_custom_call.1} parent=1 // pred_check
      _
    $region23: #{tpu_custom_call.1} parent=1 // pred_check_branch
      %30 = sbr.rel (0) target = $region25
    $region24: #{tpu_custom_call.1} parent=1 // pred_region
      _
    $region25: #{tpu_custom_call.1} parent=1 // pred_fallthru
      _
    // Predicated region
    $region26: #{tpu_custom_call.1} parent=1 // pred_check
      _
    $region27: #{tpu_custom_call.1} parent=1 // pred_check_branch
      %32 = sbr.rel (0) target = $region29
    $region28: #{tpu_custom_call.1} parent=1 // pred_region
      _
    $region29: #{tpu_custom_call.1} parent=1 // pred_fallthru
      _
    // Predicated region
    $region30: #{tpu_custom_call.1} parent=1 // pred_check
      _
    $region31: #{tpu_custom_call.1} parent=1 // pred_check_branch
      %34 = sbr.rel (0) target = $region33
    $region32: #{tpu_custom_call.1} parent=1 // pred_region
      _
    $region33: #{tpu_custom_call.1} parent=1 // pred_fallthru
      _
    // Predicated region
    $region34: #{tpu_custom_call.1} parent=1 // pred_check
      _
    $region35: #{tpu_custom_call.1} parent=1 // pred_check_branch
      %36 = sbr.rel (0) target = $region37
    $region36: #{tpu_custom_call.1} parent=1 // pred_region
      _
    $region37: #{tpu_custom_call.1} parent=1 // pred_fallthru
      _
    %v37 = vld [vmem:[%s0] sm:$0xff]
    %v38 = vld [vmem:[%s1] sm:$0xff]
    %v39 = vld [vmem:[%s1 + $0x8] sm:$0xff]
    %v40 = vld [vmem:[%s1 + $0x10] sm:$0xff]
    %v41 = vld [vmem:[%s1 + $0x18] sm:$0xff]
    %v42 = vld [vmem:[%s1 + $0x20] sm:$0xff]
    %v43 = vld [vmem:[%s1 + $0x28] sm:$0xff]
    %v44 = vld [vmem:[%s1 + $0x30] sm:$0xff]
    %v45 = vld [vmem:[%s1 + $0x38] sm:$0xff]
    %v46 = vld [vmem:[%s1 + $0x40] sm:$0xff]
    %v47 = vld [vmem:[%s1 + $0x48] sm:$0xff]
    %v48 = vld [vmem:[%s1 + $0x50] sm:$0xff]
    %v49 = vld [vmem:[%s1 + $0x58] sm:$0xff]
    %v50 = vld [vmem:[%s1 + $0x60] sm:$0xff]
    %v51 = vld [vmem:[%s1 + $0x68] sm:$0xff]
    %v52 = vld [vmem:[%s1 + $0x70] sm:$0xff]
    %v53 = vld [vmem:[%s1 + $0x78] sm:$0xff]
    %v54 = vld [vmem:[%s2] sm:$0x1]
    %v56 = vlaneseq
    %v57 = vshrl.u32 %v56, 7
    %v58 = vsub.s32 0, %v57
    %v59 = vrot.slane %v54, %v58
    %61 = vmatprep.subr.mxu0 0.0
    %62 = vmatpush1.msra.mxu0 %v38
    %63 = vmatprep.subr.mxu0 0.0
    %64 = vmatpush1.msra.mxu0 %v39
    %65 = vmatprep.subr.mxu0 0.0
    %66 = vmatpush1.msra.mxu0 %v40
    %67 = vmatprep.subr.mxu0 0.0
    %68 = vmatpush1.msra.mxu0 %v41
    %69 = vmatprep.subr.mxu0 0.0
    %70 = vmatpush1.msra.mxu0 %v42
    %71 = vmatprep.subr.mxu0 0.0
    %72 = vmatpush1.msra.mxu0 %v43
    %73 = vmatprep.subr.mxu0 0.0
    %74 = vmatpush1.msra.mxu0 %v44
    %75 = vmatprep.subr.mxu0 0.0
    %76 = vmatpush1.msra.mxu0 %v45
    %77 = vmatprep.subr.mxu0 0.0
    %78 = vmatpush1.msra.mxu0 %v46
    %79 = vmatprep.subr.mxu0 0.0
    %80 = vmatpush1.msra.mxu0 %v47
    %81 = vmatprep.subr.mxu0 0.0
    %82 = vmatpush1.msra.mxu0 %v48
    %83 = vmatprep.subr.mxu0 0.0
    %84 = vmatpush1.msra.mxu0 %v49
    %85 = vmatprep.subr.mxu0 0.0
    %86 = vmatpush1.msra.mxu0 %v50
    %87 = vmatprep.subr.mxu0 0.0
    %88 = vmatpush1.msra.mxu0 %v51
    %89 = vmatprep.subr.mxu0 0.0
    %90 = vmatpush1.msra.mxu0 %v52
    %91 = vmatprep.subr.mxu0 0.0
    %92 = vmatpush1.msra.mxu0 %v53
    %93 = vmatprep.subr.mxu0 0.0
    %94 = vmatpush1.msra.mxu0 0.0
    %95 = vmatprep.subr.mxu0 0.0
    %96 = vmatpush1.msra.mxu0 0.0
    %97 = vmatprep.subr.mxu0 0.0
    %98 = vmatpush1.msra.mxu0 0.0
    %99 = vmatprep.subr.mxu0 0.0
    %100 = vmatpush1.msra.mxu0 0.0
    %101 = vmatprep.subr.mxu0 0.0
    %102 = vmatpush1.msra.mxu0 0.0
    %103 = vmatprep.subr.mxu0 0.0
    %104 = vmatpush1.msra.mxu0 0.0
    %105 = vmatprep.subr.mxu0 0.0
    %106 = vmatpush1.msra.mxu0 0.0
    %107 = vmatprep.subr.mxu0 0.0
    %108 = vmatpush1.msra.mxu0 0.0
    %109 = vmatprep.subr.mxu0 0.0
    %110 = vmatpush1.msra.mxu0 0.0
    %111 = vmatprep.subr.mxu0 0.0
    %112 = vmatpush1.msra.mxu0 0.0
    %113 = vmatprep.subr.mxu0 0.0
    %114 = vmatpush1.msra.mxu0 0.0
    %115 = vmatprep.subr.mxu0 0.0
    %116 = vmatpush1.msra.mxu0 0.0
    %117 = vmatprep.subr.mxu0 0.0
    %118 = vmatpush1.msra.mxu0 0.0
    %119 = vmatprep.subr.mxu0 0.0
    %120 = vmatpush1.msra.mxu0 0.0
    %121 = vmatprep.subr.mxu0 0.0
    %122 = vmatpush1.msra.mxu0 0.0
    %123 = vmatprep.subr.mxu0 0.0
    %124 = vmatpush1.msra.mxu0 0.0
    %125 = vmatprep.mubr.f32.mxu0 0.0
    %126 = vmatmul.mubr.f32.gmra.mrb[0].mxu0 %v37
    %v127 = vpop.f32.mrb[0].mxu0
    %v128 = vadd.f32 %v59, %v127
    %v129 = vpop.f32.mrb[0].mxu0
    %130 = vdwg.mxu0
    %v131 = vmax.f32 %v128, 0.0
    %v132 = vld [vmem:[%s3] sm:$0xff]
    %v133 = vld [vmem:[%s3 + $0x8] sm:$0xff]
    %v134 = vld [vmem:[%s3 + $0x10] sm:$0xff]
    %v135 = vld [vmem:[%s3 + $0x18] sm:$0xff]
    %v136 = vld [vmem:[%s3 + $0x20] sm:$0xff]
    %v137 = vld [vmem:[%s3 + $0x28] sm:$0xff]
    %v138 = vld [vmem:[%s3 + $0x30] sm:$0xff]
    %v139 = vld [vmem:[%s3 + $0x38] sm:$0xff]
    %v140 = vld [vmem:[%s3 + $0x40] sm:$0xff]
    %v141 = vld [vmem:[%s3 + $0x48] sm:$0xff]
    %v142 = vld [vmem:[%s3 + $0x50] sm:$0xff]
    %v143 = vld [vmem:[%s3 + $0x58] sm:$0xff]
    %v144 = vld [vmem:[%s3 + $0x60] sm:$0xff]
    %v145 = vld [vmem:[%s3 + $0x68] sm:$0xff]
    %v146 = vld [vmem:[%s3 + $0x70] sm:$0xff]
    %v147 = vld [vmem:[%s3 + $0x78] sm:$0xff]
    %v148 = vld [vmem:[%s4] sm:$0x1]
    %v150 = vlaneseq
    %v151 = vshrl.u32 %v150, 7
    %v152 = vsub.s32 0, %v151
    %v153 = vrot.slane %v148, %v152
    %155 = vmatprep.subr.mxu0 0.0
    %156 = vmatpush1.msra.mxu0 %v132
    %157 = vmatprep.subr.mxu0 0.0
    %158 = vmatpush1.msra.mxu0 %v133
    %159 = vmatprep.subr.mxu0 0.0
    %160 = vmatpush1.msra.mxu0 %v134
    %161 = vmatprep.subr.mxu0 0.0
    %162 = vmatpush1.msra.mxu0 %v135
    %163 = vmatprep.subr.mxu0 0.0
    %164 = vmatpush1.msra.mxu0 %v136
    %165 = vmatprep.subr.mxu0 0.0
    %166 = vmatpush1.msra.mxu0 %v137
    %167 = vmatprep.subr.mxu0 0.0
    %168 = vmatpush1.msra.mxu0 %v138
    %169 = vmatprep.subr.mxu0 0.0
    %170 = vmatpush1.msra.mxu0 %v139
    %171 = vmatprep.subr.mxu0 0.0
    %172 = vmatpush1.msra.mxu0 %v140
    %173 = vmatprep.subr.mxu0 0.0
    %174 = vmatpush1.msra.mxu0 %v141
    %175 = vmatprep.subr.mxu0 0.0
    %176 = vmatpush1.msra.mxu0 %v142
    %177 = vmatprep.subr.mxu0 0.0
    %178 = vmatpush1.msra.mxu0 %v143
    %179 = vmatprep.subr.mxu0 0.0
    %180 = vmatpush1.msra.mxu0 %v144
    %181 = vmatprep.subr.mxu0 0.0
    %182 = vmatpush1.msra.mxu0 %v145
    %183 = vmatprep.subr.mxu0 0.0
    %184 = vmatpush1.msra.mxu0 %v146
    %185 = vmatprep.subr.mxu0 0.0
    %186 = vmatpush1.msra.mxu0 %v147
    %187 = vmatprep.subr.mxu0 0.0
    %188 = vmatpush1.msra.mxu0 0.0
    %189 = vmatprep.subr.mxu0 0.0
    %190 = vmatpush1.msra.mxu0 0.0
    %191 = vmatprep.subr.mxu0 0.0
    %192 = vmatpush1.msra.mxu0 0.0
    %193 = vmatprep.subr.mxu0 0.0
    %194 = vmatpush1.msra.mxu0 0.0
    %195 = vmatprep.subr.mxu0 0.0
    %196 = vmatpush1.msra.mxu0 0.0
    %197 = vmatprep.subr.mxu0 0.0
    %198 = vmatpush1.msra.mxu0 0.0
    %199 = vmatprep.subr.mxu0 0.0
    %200 = vmatpush1.msra.mxu0 0.0
    %201 = vmatprep.subr.mxu0 0.0
    %202 = vmatpush1.msra.mxu0 0.0
    %203 = vmatprep.subr.mxu0 0.0
    %204 = vmatpush1.msra.mxu0 0.0
    %205 = vmatprep.subr.mxu0 0.0
    %206 = vmatpush1.msra.mxu0 0.0
    %207 = vmatprep.subr.mxu0 0.0
    %208 = vmatpush1.msra.mxu0 0.0
    %209 = vmatprep.subr.mxu0 0.0
    %210 = vmatpush1.msra.mxu0 0.0
    %211 = vmatprep.subr.mxu0 0.0
    %212 = vmatpush1.msra.mxu0 0.0
    %213 = vmatprep.subr.mxu0 0.0
    %214 = vmatpush1.msra.mxu0 0.0
    %215 = vmatprep.subr.mxu0 0.0
    %216 = vmatpush1.msra.mxu0 0.0
    %217 = vmatprep.subr.mxu0 0.0
    %218 = vmatpush1.msra.mxu0 0.0
    %219 = vmatprep.mubr.f32.mxu0 0.0
    %220 = vmatmul.mubr.f32.gmra.mrb[0].mxu0 %v131
    %v221 = vpop.f32.mrb[0].mxu0
    %v222 = vadd.f32 %v153, %v221
    %v223 = vpop.f32.mrb[0].mxu0
    %224 = vdwg.mxu0
    %v225 = vmax.f32 %v222, 0.0
    %v226 = vld [vmem:[%s5] sm:$0xff]
    %v227 = vld [vmem:[%s5 + $0x8] sm:$0xff]
    %v228 = vld [vmem:[%s5 + $0x10] sm:$0xff]
    %v229 = vld [vmem:[%s5 + $0x18] sm:$0xff]
    %v230 = vld [vmem:[%s5 + $0x20] sm:$0xff]
    %v231 = vld [vmem:[%s5 + $0x28] sm:$0xff]
    %v232 = vld [vmem:[%s5 + $0x30] sm:$0xff]
    %v233 = vld [vmem:[%s5 + $0x38] sm:$0xff]
    %v234 = vld [vmem:[%s6] sm:$0x1]
    %v236 = vlaneseq
    %v237 = vshrl.u32 %v236, 7
    %v238 = vsub.s32 0, %v237
    %v239 = vrot.slane %v234, %v238
    %vm241 = vcmask 523264
    %v243 = vsel %vm241, %v225, 0
    %245 = vmatprep.subr.mxu0 0.0
    %246 = vmatpush1.msra.mxu0 %v226
    %247 = vmatprep.subr.mxu0 0.0
    %248 = vmatpush1.msra.mxu0 %v227
    %249 = vmatprep.subr.mxu0 0.0
    %250 = vmatpush1.msra.mxu0 %v228
    %251 = vmatprep.subr.mxu0 0.0
    %252 = vmatpush1.msra.mxu0 %v229
    %253 = vmatprep.subr.mxu0 0.0
    %254 = vmatpush1.msra.mxu0 %v230
    %255 = vmatprep.subr.mxu0 0.0
    %256 = vmatpush1.msra.mxu0 %v231
    %257 = vmatprep.subr.mxu0 0.0
    %258 = vmatpush1.msra.mxu0 %v232
    %259 = vmatprep.subr.mxu0 0.0
    %260 = vmatpush1.msra.mxu0 %v233
    %261 = vmatprep.subr.mxu0 0.0
    %262 = vmatpush1.msra.mxu0 0.0
    %263 = vmatprep.subr.mxu0 0.0
    %264 = vmatpush1.msra.mxu0 0.0
    %265 = vmatprep.subr.mxu0 0.0
    %266 = vmatpush1.msra.mxu0 0.0
    %267 = vmatprep.subr.mxu0 0.0
    %268 = vmatpush1.msra.mxu0 0.0
    %269 = vmatprep.subr.mxu0 0.0
    %270 = vmatpush1.msra.mxu0 0.0
    %271 = vmatprep.subr.mxu0 0.0
    %272 = vmatpush1.msra.mxu0 0.0
    %273 = vmatprep.subr.mxu0 0.0
    %274 = vmatpush1.msra.mxu0 0.0
    %275 = vmatprep.subr.mxu0 0.0
    %276 = vmatpush1.msra.mxu0 0.0
    %277 = vmatprep.subr.mxu0 0.0
    %278 = vmatpush1.msra.mxu0 0.0
    %279 = vmatprep.subr.mxu0 0.0
    %280 = vmatpush1.msra.mxu0 0.0
    %281 = vmatprep.subr.mxu0 0.0
    %282 = vmatpush1.msra.mxu0 0.0
    %283 = vmatprep.subr.mxu0 0.0
    %284 = vmatpush1.msra.mxu0 0.0
    %285 = vmatprep.subr.mxu0 0.0
    %286 = vmatpush1.msra.mxu0 0.0
    %287 = vmatprep.subr.mxu0 0.0
    %288 = vmatpush1.msra.mxu0 0.0
    %289 = vmatprep.subr.mxu0 0.0
    %290 = vmatpush1.msra.mxu0 0.0
    %291 = vmatprep.subr.mxu0 0.0
    %292 = vmatpush1.msra.mxu0 0.0
    %293 = vmatprep.subr.mxu0 0.0
    %294 = vmatpush1.msra.mxu0 0.0
    %295 = vmatprep.subr.mxu0 0.0
    %296 = vmatpush1.msra.mxu0 0.0
    %297 = vmatprep.subr.mxu0 0.0
    %298 = vmatpush1.msra.mxu0 0.0
    %299 = vmatprep.subr.mxu0 0.0
    %300 = vmatpush1.msra.mxu0 0.0
    %301 = vmatprep.subr.mxu0 0.0
    %302 = vmatpush1.msra.mxu0 0.0
    %303 = vmatprep.subr.mxu0 0.0
    %304 = vmatpush1.msra.mxu0 0.0
    %305 = vmatprep.subr.mxu0 0.0
    %306 = vmatpush1.msra.mxu0 0.0
    %307 = vmatprep.subr.mxu0 0.0
    %308 = vmatpush1.msra.mxu0 0.0
    %309 = vmatprep.mubr.f32.mxu0 0.0
    %310 = vmatmul.mubr.f32.gmra.mrb[0].mxu0 %v243
    %v311 = vpop.f32.mrb[0].mxu0
    %v312 = vadd.f32 %v239, %v311
    %v313 = vpop.f32.mrb[0].mxu0
    %314 = vdwg.mxu0
    %315 = vst.msk [vmem:[#allocation3] sm:$0xff] %vm241, %v312
    %v316 = vld [vmem:[%s7] sm:$0xff]
    %v317 = vld [vmem:[%s7 + $0x8] sm:$0xff]
    %v318 = vld [vmem:[%s7 + $0x10] sm:$0xff]
    %v319 = vld [vmem:[%s7 + $0x18] sm:$0xff]
    %v320 = vld [vmem:[%s7 + $0x20] sm:$0xff]
    %v321 = vld [vmem:[%s7 + $0x28] sm:$0xff]
    %v322 = vld [vmem:[%s7 + $0x30] sm:$0xff]
    %v323 = vld [vmem:[%s7 + $0x38] sm:$0xff]
    %v324 = vld [vmem:[#allocation2] sm:$0x1]
    %v326 = vlaneseq
    %v327 = vshrl.u32 %v326, 7
    %v328 = vsub.s32 0, %v327
    %v329 = vrot.slane %v324, %v328
    %v332 = vsel %vm241, %v312, 0
    %334 = vmatprep.subr.mxu0 0.0
    %335 = vmatpush1.msra.mxu0 %v316
    %336 = vmatprep.subr.mxu0 0.0
    %337 = vmatpush1.msra.mxu0 %v317
    %338 = vmatprep.subr.mxu0 0.0
    %339 = vmatpush1.msra.mxu0 %v318
    %340 = vmatprep.subr.mxu0 0.0
    %341 = vmatpush1.msra.mxu0 %v319
    %342 = vmatprep.subr.mxu0 0.0
    %343 = vmatpush1.msra.mxu0 %v320
    %344 = vmatprep.subr.mxu0 0.0
    %345 = vmatpush1.msra.mxu0 %v321
    %346 = vmatprep.subr.mxu0 0.0
    %347 = vmatpush1.msra.mxu0 %v322
    %348 = vmatprep.subr.mxu0 0.0
    %349 = vmatpush1.msra.mxu0 %v323
    %350 = vmatprep.subr.mxu0 0.0
    %351 = vmatpush1.msra.mxu0 0.0
    %352 = vmatprep.subr.mxu0 0.0
    %353 = vmatpush1.msra.mxu0 0.0
    %354 = vmatprep.subr.mxu0 0.0
    %355 = vmatpush1.msra.mxu0 0.0
    %356 = vmatprep.subr.mxu0 0.0
    %357 = vmatpush1.msra.mxu0 0.0
    %358 = vmatprep.subr.mxu0 0.0
    %359 = vmatpush1.msra.mxu0 0.0
    %360 = vmatprep.subr.mxu0 0.0
    %361 = vmatpush1.msra.mxu0 0.0
    %362 = vmatprep.subr.mxu0 0.0
    %363 = vmatpush1.msra.mxu0 0.0
    %364 = vmatprep.subr.mxu0 0.0
    %365 = vmatpush1.msra.mxu0 0.0
    %366 = vmatprep.subr.mxu0 0.0
    %367 = vmatpush1.msra.mxu0 0.0
    %368 = vmatprep.subr.mxu0 0.0
    %369 = vmatpush1.msra.mxu0 0.0
    %370 = vmatprep.subr.mxu0 0.0
    %371 = vmatpush1.msra.mxu0 0.0
    %372 = vmatprep.subr.mxu0 0.0
    %373 = vmatpush1.msra.mxu0 0.0
    %374 = vmatprep.subr.mxu0 0.0
    %375 = vmatpush1.msra.mxu0 0.0
    %376 = vmatprep.subr.mxu0 0.0
    %377 = vmatpush1.msra.mxu0 0.0
    %378 = vmatprep.subr.mxu0 0.0
    %379 = vmatpush1.msra.mxu0 0.0
    %380 = vmatprep.subr.mxu0 0.0
    %381 = vmatpush1.msra.mxu0 0.0
    %382 = vmatprep.subr.mxu0 0.0
    %383 = vmatpush1.msra.mxu0 0.0
    %384 = vmatprep.subr.mxu0 0.0
    %385 = vmatpush1.msra.mxu0 0.0
    %386 = vmatprep.subr.mxu0 0.0
    %387 = vmatpush1.msra.mxu0 0.0
    %388 = vmatprep.subr.mxu0 0.0
    %389 = vmatpush1.msra.mxu0 0.0
    %390 = vmatprep.subr.mxu0 0.0
    %391 = vmatpush1.msra.mxu0 0.0
    %392 = vmatprep.subr.mxu0 0.0
    %393 = vmatpush1.msra.mxu0 0.0
    %394 = vmatprep.subr.mxu0 0.0
    %395 = vmatpush1.msra.mxu0 0.0
    %396 = vmatprep.subr.mxu0 0.0
    %397 = vmatpush1.msra.mxu0 0.0
    %398 = vmatprep.mubr.f32.mxu0 0.0
    %399 = vmatmul.mubr.f32.gmra.mrb[0].mxu0 %v332
    %v400 = vpop.f32.mrb[0].mxu0
    %v401 = vadd.f32 %v329, %v400
    %v402 = vpop.f32.mrb[0].mxu0
    %403 = vdwg.mxu0
    %vm404 = vcmask 7168
    %405 = vst.msk [vmem:[%s10] sm:$0xff] %vm404, %v401
    // Predicated region
    $region38: #{tpu_custom_call.1} parent=1 // pred_check
      _
    $region39: #{tpu_custom_call.1} parent=1 // pred_check_branch
      %407 = sbr.rel (0) target = $region41
    $region40: #{tpu_custom_call.1} parent=1 // pred_region
      %s409 = ssub.s32 128, 128
      %410 = vsyncadd [#allocation4], %s409
      %s412 = sshll.u32 [#allocation3], 4
      %s413 = int_to_ptr.vmem [resolvable:$true] %s412
      %415 = dma.vmem_to_hbm [thread:$0]  %s413, 128, %s9, [#allocation4]
    $region41: #{tpu_custom_call.1} parent=1 // pred_fallthru
      _
    // Predicated region
    $region42: #{tpu_custom_call.1} parent=1 // pred_check
      _
    $region43: #{tpu_custom_call.1} parent=1 // pred_check_branch
      %417 = sbr.rel (0) target = $region45
    $region44: #{tpu_custom_call.1} parent=1 // pred_region
      _
    $region45: #{tpu_custom_call.1} parent=1 // pred_fallthru
      _
    // Predicated region
    $region46: #{tpu_custom_call.1} parent=1 // pred_check
      _
    $region47: #{tpu_custom_call.1} parent=1 // pred_check_branch
      %419 = sbr.rel (0) target = $region49
    $region48: #{tpu_custom_call.1} parent=1 // pred_region
      %420 = dma.done [#allocation4], 128
    $region49: #{tpu_custom_call.1} parent=1 // pred_fallthru
      _
    // Predicated region
    $region50: #{tpu_custom_call.1} parent=1 // pred_check
      _
    $region51: #{tpu_custom_call.1} parent=1 // pred_check_branch
      %422 = sbr.rel (0) target = $region53
    $region52: #{tpu_custom_call.1} parent=1 // pred_region
      _
    $region53: #{tpu_custom_call.1} parent=1 // pred_fallthru
      _
    %423 = vsyncpa [#allocation4], 1

</llo_original>
